<compile_context>
chip_gen: v7x
topology: tpu7x:2x2x1
jax: 0.10.0
libtpu: 0.0.40
codegen_flags: <defaults>
</compile_context>

<pallas_src>
import functools

import jax
import jax.numpy as jnp
import numpy as np
from jax.experimental import pallas as pl
from jax.experimental.pallas import tpu as pltpu


# ---------------------------------------------------------------------------
# Compiler-parameter / tiling helpers
# ---------------------------------------------------------------------------

@functools.lru_cache(maxsize=None)
def _vmem_limit_bytes():
    """Scoped-VMEM limit with headroom (None -> keep compiler default)."""
    try:
        cap = int(pltpu.get_tpu_info().vmem_capacity_bytes)
        return max(min(cap - (16 << 20), 96 << 20), 16 << 20)
    except Exception:
        return None


def _cparams(n_grid_axes):
    return pltpu.CompilerParams(
        dimension_semantics=("parallel",) * n_grid_axes,
        vmem_limit_bytes=_vmem_limit_bytes(),
    )


@functools.lru_cache(maxsize=None)
def _mxu_n_width():
    """Preferred output-channel tile: 256 on v6e/v7x (2x256^2 MXU), else 128."""
    try:
        kind = jax.devices()[0].device_kind.lower()
        if any(t in kind for t in ("v6", "v7", "tpu7", "7x")):
            return 256
    except Exception:
        pass
    return 128


def _cout_tile(cout):
    for t in (_mxu_n_width(), 128):
        if cout % t == 0:
            return t
    return cout  # small layers: take the full channel dim


def _pick_bblk(B, H, W):
    """Batch sub-block folded into the matmul M dim.

    Target M = bblk*H*W >= ~256 rows (fills a 256-row v6e/v7x MXU pass, >=2
    passes on v5e).  Large-spatial layers keep bblk == 1 so the batch axis
    still provides >= 2 parallel grid steps (v7x megacore) when B >= 2.
    """
    bblk = min(B, max(1, -(-256 // (H * W))))
    while B % bblk:           # keep an exact divisor of B
        bblk -= 1
    return bblk


# ---------------------------------------------------------------------------
# Kernel 1: deconv1  (ConvTranspose2d(100, 8d, 4, stride=1, pad=0) on 1x1 input)
#   Pure matmul: out[b, kh, kw, co] = sum_ci x[b, ci] * W[ci, co, kh, kw]
#   Single grid step; weight columns ordered (kh, kw, cout) so the NHWC
#   reshape in the wrapper is a bitcast.
# ---------------------------------------------------------------------------

def _deconv1_kernel(x_ref, w_ref, scale_ref, shift_ref, out_ref):
    # x_ref:     (B, Cin)          bf16 noise
    # w_ref:     (Cin, 16*Cout)    bf16, columns ordered (kh, kw, cout)
    # scale_ref: (1, 16*Cout)      f32 fused BN scale (tiled per (kh,kw))
    # shift_ref: (1, 16*Cout)      f32 fused BN shift
    # out_ref:   (B, 16*Cout)      bf16
    y = jnp.dot(x_ref[...], w_ref[...], preferred_element_type=jnp.float32)
    y = y * scale_ref[...] + shift_ref[...]
    y = jnp.where(y >= 0.0, y, 0.2 * y)            # LeakyReLU(0.2)
    out_ref[...] = y.astype(out_ref.dtype)


def deconv1_layer(x2d, layer):
    """x2d: (B, 100) bf16 noise.  Returns (B, 4, 4, Cout) bf16 NHWC."""
    B = x2d.shape[0]
    cin, cout, K = layer["cin"], layer["cout"], layer["K"]
    kk = K * K
    y = pl.pallas_call(
        _deconv1_kernel,
        out_shape=jax.ShapeDtypeStruct((B, kk * cout), jnp.bfloat16),
        grid=(1,),
        in_specs=[
            pl.BlockSpec((B, cin), lambda i: (0, 0)),
            pl.BlockSpec((cin, kk * cout), lambda i: (0, 0)),
            pl.BlockSpec((1, kk * cout), lambda i: (0, 0)),
            pl.BlockSpec((1, kk * cout), lambda i: (0, 0)),
        ],
        out_specs=pl.BlockSpec((B, kk * cout), lambda i: (0, 0)),
        compiler_params=_cparams(1),
    )(x2d, layer["w_mm"], layer["scale16"], layer["shift16"])
    # columns are (kh, kw, cout)-ordered -> NHWC via a pure bitcast reshape
    return y.reshape(B, K, K, cout)


# ---------------------------------------------------------------------------
# Kernel 2: polyphase ConvTranspose2d(K=4, stride=2, pad=1) + BN/bias + act
#   out[b, 2m+ph, 2n+pw, :] =
#       sum_{th,tw} xpad[b, m+ph+th, n+pw+tw, :] @ W[:, :, 3-ph-2*th, 3-pw-2*tw]
#   (xpad = input padded by 1 pixel; only 4 of the 16 taps touch each parity)
# ---------------------------------------------------------------------------

def _convt_s2_kernel(x_ref, w_ref, scale_ref, shift_ref, out_ref, xp_ref,
                     *, H, W, act):
    # x_ref:     (Bb, H, W, Cin)        bf16  un-padded activation block
    # w_ref:     (2, 2, 2, 2, Cin, tC)  bf16  [ph, pw, th, tw, ci, co]
    # scale_ref: (1, tC) f32   fused BN scale (ones for the bias-only layer)
    # shift_ref: (1, tC) f32   fused BN shift (conv bias for the last layer)
    # out_ref:   (Bb, 2H, 2W, tC)
    # xp_ref:    (Bb, H+2, W+2, Cin)    bf16 VMEM scratch (fused 1-px halo pad)
    Bb = x_ref.shape[0]
    cin = x_ref.shape[-1]
    tc = out_ref.shape[-1]
    M = Bb * H * W

    # Fused zero-padding: build the haloed activation in VMEM (replaces the
    # former wrapper-side jnp.pad and its extra HBM round-trip).  Zero every
    # step: cheap, and safe under megacore grid splitting.
    xp_ref[...] = jnp.zeros(xp_ref.shape, xp_ref.dtype)
    xp_ref[:, 1:H + 1, 1:W + 1, :] = x_ref[...]

    # 9 distinct shifted windows (the 16 taps only use (rh,rw)=(ph+th,pw+tw)),
    # each flattened to (M, Cin): the batch block folds into the matmul M dim.
    wins = [[xp_ref[:, rh:rh + H, rw:rw + W, :].reshape(M, cin)
             for rw in range(3)] for rh in range(3)]

    scale = scale_ref[...]
    shift = shift_ref[...]
    rows = []
    for ph in range(2):                          # static unroll: 2x2 parities
        cols = []
        for pw in range(2):
            acc = None
            for th in range(2):                  # 4 taps per parity
                for tw in range(2):
                    part = jnp.dot(wins[ph + th][pw + tw],
                                   w_ref[ph, pw, th, tw],
                                   preferred_element_type=jnp.float32)
                    acc = part if acc is None else acc + part
            y = acc * scale + shift
            if act == "leaky":
                y = jnp.where(y >= 0.0, y, 0.2 * y)   # LeakyReLU(0.2)
            else:
                y = jnp.tanh(y)
            cols.append(y.astype(out_ref.dtype).reshape(Bb, H, W, tc))
        # width interleave: even output cols <- pw=0, odd <- pw=1
        rows.append(jnp.stack(cols, axis=3).reshape(Bb, H, 2 * W, tc))
    # height interleave over a major dim (free relabel, no data movement)
    out_ref[...] = jnp.stack(rows, axis=2).reshape(Bb, 2 * H, 2 * W, tc)


def convt_s2_layer(x, layer, out_dtype=jnp.bfloat16):
    """x: (B, H, W, Cin) bf16 NHWC (un-padded).  Returns (B, 2H, 2W, Cout)."""
    B, H, W, cin = x.shape
    cout = layer["cout"]
    tc = _cout_tile(cout)
    bblk = _pick_bblk(B, H, W)
    nj, nb = cout // tc, B // bblk

    kern = functools.partial(_convt_s2_kernel, H=H, W=W, act=layer["act"])
    return pl.pallas_call(
        kern,
        out_shape=jax.ShapeDtypeStruct((B, 2 * H, 2 * W, cout), out_dtype),
        # cout tile OUTER, batch block INNERMOST: the weight/scale/shift block
        # indices depend only on j, so they are DMA'd once per cout tile and
        # reused across all batch blocks (no per-batch weight re-streaming).
        grid=(nj, nb),
        in_specs=[
            pl.BlockSpec((bblk, H, W, cin), lambda j, b: (b, 0, 0, 0)),
            pl.BlockSpec((2, 2, 2, 2, cin, tc), lambda j, b: (0, 0, 0, 0, 0, j)),
            pl.BlockSpec((1, tc), lambda j, b: (0, j)),
            pl.BlockSpec((1, tc), lambda j, b: (0, j)),
        ],
        out_specs=pl.BlockSpec((bblk, 2 * H, 2 * W, tc),
                               lambda j, b: (b, 0, 0, j)),
        scratch_shapes=[pltpu.VMEM((bblk, H + 2, W + 2, cin), jnp.bfloat16)],
        compiler_params=_cparams(2),
    )(x, layer["w_poly"], layer["scale"].reshape(1, cout),
      layer["shift"].reshape(1, cout))


# ---------------------------------------------------------------------------
# Parameter construction (kernel-ready weights precomputed ONCE, in bf16)
# ---------------------------------------------------------------------------

def _polyphase_weights(w):
    """w: (Cin, Cout, 4, 4) ConvTranspose2d weight -> (2,2,2,2,Cin,Cout) bf16."""
    cin, cout = w.shape[0], w.shape[1]
    wk = jnp.transpose(w, (2, 3, 0, 1))          # (kh, kw, Cin, Cout)
    taps = []
    for ph in range(2):
        for pw in range(2):
            for th in range(2):
                for tw in range(2):
                    taps.append(wk[3 - ph - 2 * th, 3 - pw - 2 * tw])
    return jnp.stack(taps, axis=0).reshape(2, 2, 2, 2, cin, cout)


def init_generator_params(key, d=16):
    """Deterministic synthetic parameters matching Generator(d) layer shapes."""
    eps = 1e-5
    cfgs = [  # (cin, cout, K, stride, pad)  -- deconv1..deconv5
        (100, d * 8, 4, 1, 0),
        (d * 8, d * 4, 4, 2, 1),
        (d * 4, d * 2, 4, 2, 1),
        (d * 2, d, 4, 2, 1),
        (d, 3, 4, 2, 1),
    ]
    params = []
    for i, (cin, cout, K, s, p) in enumerate(cfgs):
        key, kw, kg, kb = jax.random.split(key, 4)
        w = (0.02 * jax.random.normal(kw, (cin, cout, K, K))).astype(jnp.float32)
        if i < 4:  # HorseUnit: convT(no bias) + BatchNorm(eval) + Dropout(id) + LeakyReLU
            gamma = 1.0 + 0.1 * jax.random.normal(kg, (cout,))
            beta = 0.1 * jax.random.normal(kb, (cout,))
            running_mean = jnp.zeros((cout,))
            running_var = jnp.ones((cout,))
            scale = (gamma / jnp.sqrt(running_var + eps)).astype(jnp.float32)
            shift = (beta - running_mean * scale).astype(jnp.float32)
            act = "leaky"
        else:      # deconv5 (has bias) + Tanh
            bias = (0.01 * jax.random.normal(kb, (cout,))).astype(jnp.float32)
            scale = jnp.ones((cout,), jnp.float32)
            shift = bias
            act = "tanh"

        layer = dict(w_raw=w, scale=scale, shift=shift, act=act,
                     stride=s, pad=p, K=K, cin=cin, cout=cout)
        wb = w.astype(jnp.bfloat16)               # bf16 MXU operands
        if i == 0:
            # columns ordered (kh, kw, cout): the kernel's (B, 16*cout) output
            # reshapes to NHWC (B, 4, 4, cout) as a pure bitcast.
            layer["w_mm"] = jnp.transpose(wb, (0, 2, 3, 1)).reshape(cin, K * K * cout)
            layer["scale16"] = jnp.tile(scale, K * K).reshape(1, K * K * cout)
            layer["shift16"] = jnp.tile(shift, K * K).reshape(1, K * K * cout)
        else:
            layer["w_poly"] = _polyphase_weights(wb)
        params.append(layer)
    return params


# ---------------------------------------------------------------------------
# Forward passes
# ---------------------------------------------------------------------------

def generator_forward(x, params):
    """x: (B, 100, 1, 1) (or (B, 100)) noise.  Returns (B, 3, 64, 64) NCHW."""
    B = x.shape[0]
    h = x.reshape(B, 100).astype(jnp.bfloat16)
    h = deconv1_layer(h, params[0])                           # (B, 4, 4, 8d)
    for layer in params[1:-1]:
        h = convt_s2_layer(h, layer, out_dtype=jnp.bfloat16)
    h = convt_s2_layer(h, params[-1], out_dtype=jnp.float32)  # (B, 64, 64, 3)
    return jnp.transpose(h, (0, 3, 1, 2))                     # NHWC -> NCHW


def reference_forward(x, params):
    """Pure-JAX/XLA reference using the same numerical recipe as the kernels
    (bf16 MXU operands, f32 accumulation, bf16 intermediate activations)."""
    B = x.shape[0]
    h = jnp.transpose(x.reshape(B, 100, 1, 1), (0, 2, 3, 1))
    for layer in params:
        w_t, K = layer["w_raw"], layer["K"]
        s, p = layer["stride"], layer["pad"]
        w_conv = jnp.transpose(w_t[:, :, ::-1, ::-1], (2, 3, 0, 1)).astype(jnp.bfloat16)
        pp = K - 1 - p
        h = jax.lax.conv_general_dilated(
            h.astype(jnp.bfloat16), w_conv, window_strides=(1, 1),
            padding=[(pp, pp), (pp, pp)], lhs_dilation=(s, s),
            dimension_numbers=("NHWC", "HWIO", "NHWC"),
            preferred_element_type=jnp.float32)
        h = h * layer["scale"] + layer["shift"]
        if layer["act"] == "leaky":
            h = jnp.where(h >= 0, h, 0.2 * h).astype(jnp.bfloat16)
        else:
            h = jnp.tanh(h)
    return jnp.transpose(h, (0, 3, 1, 2))


if __name__ == "__main__":
    key = jax.random.PRNGKey(0)
    kx, kp = jax.random.split(key)

    d = 16          # small width for the test (module default is d=128)
    B = 2
    x = jax.random.normal(kx, (B, 100, 1, 1), jnp.float32)  # noise, as in forward()
    params = init_generator_params(kp, d=d)

    out = jax.block_until_ready(generator_forward(x, params))
    assert out.shape == (B, 3, 64, 64), out.shape

    ref = jax.block_until_ready(reference_forward(x, params))
    np.testing.assert_allclose(np.asarray(out, dtype=np.float32),
                               np.asarray(ref, dtype=np.float32),
                               atol=2e-2, rtol=2e-2)
    print("KERNEL_OK")
</pallas_src>

<mosaic_0001>
module attributes {stable_mosaic.version = 11 : i64} {
  func.func @_deconv1_kernel(%arg0: i32, %arg1: memref<2x100xbf16, #tpu.memory_space<vmem>>, %arg2: memref<100x2048xbf16, #tpu.memory_space<vmem>>, %arg3: memref<1x2048xf32, #tpu.memory_space<vmem>>, %arg4: memref<1x2048xf32, #tpu.memory_space<vmem>>, %arg5: memref<2x2048xbf16, #tpu.memory_space<vmem>>) attributes {dimension_semantics = [#tpu.dimension_semantics<parallel>], iteration_bounds = array<i64: 1>, scalar_prefetch = 0 : i64, scratch_operands = 0 : i64, tpu.core_type = #tpu.core_type<tc>, window_params = [{pipeline_mode = #tpu.pipeline_mode<synchronous>, transform_indices = @transform_0, window_bounds = array<i64: 2, 100>}, {pipeline_mode = #tpu.pipeline_mode<synchronous>, transform_indices = @transform_1, window_bounds = array<i64: 100, 2048>}, {pipeline_mode = #tpu.pipeline_mode<synchronous>, transform_indices = @transform_2, window_bounds = array<i64: 1, 2048>}, {pipeline_mode = #tpu.pipeline_mode<synchronous>, transform_indices = @transform_3, window_bounds = array<i64: 1, 2048>}, {pipeline_mode = #tpu.pipeline_mode<synchronous>, transform_indices = @transform_4, window_bounds = array<i64: 2, 2048>}]} {
    %c0 = arith.constant 0 : index
    %c0_0 = arith.constant 0 : index
    %0 = vector.load %arg1[%c0, %c0_0] : memref<2x100xbf16, #tpu.memory_space<vmem>>, vector<2x100xbf16>
    %c0_1 = arith.constant 0 : index
    %c0_2 = arith.constant 0 : index
    %1 = vector.load %arg2[%c0_1, %c0_2] : memref<100x2048xbf16, #tpu.memory_space<vmem>>, vector<100x2048xbf16>
    %cst = arith.constant dense<0.000000e+00> : vector<2x2048xf32>
    %2 = tpu.matmul %0, %1, %cst {dimension_numbers = #tpu.dot_dimension_numbers<[1], [0], [0], [1], [0, 0, 1, 1], [], []>} : vector<2x100xbf16>, vector<100x2048xbf16>, vector<2x2048xf32> -> vector<2x2048xf32>
    %c0_3 = arith.constant 0 : index
    %c0_4 = arith.constant 0 : index
    %3 = vector.load %arg3[%c0_3, %c0_4] : memref<1x2048xf32, #tpu.memory_space<vmem>>, vector<1x2048xf32>
    %4 = vector.broadcast %3 : vector<1x2048xf32> to vector<2x2048xf32>
    %5 = arith.mulf %2, %4 : vector<2x2048xf32>
    %c0_5 = arith.constant 0 : index
    %c0_6 = arith.constant 0 : index
    %6 = vector.load %arg4[%c0_5, %c0_6] : memref<1x2048xf32, #tpu.memory_space<vmem>>, vector<1x2048xf32>
    %7 = vector.broadcast %6 : vector<1x2048xf32> to vector<2x2048xf32>
    %8 = arith.addf %5, %7 : vector<2x2048xf32>
    %cst_7 = arith.constant 0.000000e+00 : f32
    %9 = vector.broadcast %cst_7 : f32 to vector<2x2048xf32>
    %10 = arith.cmpf oge, %8, %9 : vector<2x2048xf32>
    %cst_8 = arith.constant 2.000000e-01 : f32
    %11 = vector.broadcast %cst_8 : f32 to vector<2x2048xf32>
    %12 = arith.mulf %11, %8 : vector<2x2048xf32>
    %13 = arith.select %10, %8, %12 : vector<2x2048xi1>, vector<2x2048xf32>
    %14 = arith.truncf %13 : vector<2x2048xf32> to vector<2x2048xbf16>
    %c0_9 = arith.constant 0 : index
    %c0_10 = arith.constant 0 : index
    %15 = vector.load %arg5[%c0_9, %c0_10] : memref<2x2048xbf16, #tpu.memory_space<vmem>>, vector<2x2048xbf16>
    tpu.vector_store %arg5[%c0_9, %c0_10], %14 {strides = array<i32>} : memref<2x2048xbf16, #tpu.memory_space<vmem>>, vector<2x2048xbf16>,
    return
  }
  func.func @transform_0(%arg0: i32) -> (i32, i32) {
    %c0_i32 = arith.constant 0 : i32
    %c0_i32_0 = arith.constant 0 : i32
    %c0_i32_1 = arith.constant 0 : i32
    return %c0_i32, %c0_i32_0 : i32, i32
  }
  func.func @transform_1(%arg0: i32) -> (i32, i32) {
    %c0_i32 = arith.constant 0 : i32
    %c0_i32_0 = arith.constant 0 : i32
    %c0_i32_1 = arith.constant 0 : i32
    return %c0_i32, %c0_i32_0 : i32, i32
  }
  func.func @transform_2(%arg0: i32) -> (i32, i32) {
    %c0_i32 = arith.constant 0 : i32
    %c0_i32_0 = arith.constant 0 : i32
    %c0_i32_1 = arith.constant 0 : i32
    return %c0_i32, %c0_i32_0 : i32, i32
  }
  func.func @transform_3(%arg0: i32) -> (i32, i32) {
    %c0_i32 = arith.constant 0 : i32
    %c0_i32_0 = arith.constant 0 : i32
    %c0_i32_1 = arith.constant 0 : i32
    return %c0_i32, %c0_i32_0 : i32, i32
  }
  func.func @transform_4(%arg0: i32) -> (i32, i32) {
    %c0_i32 = arith.constant 0 : i32
    %c0_i32_0 = arith.constant 0 : i32
    %c0_i32_1 = arith.constant 0 : i32
    return %c0_i32, %c0_i32_0 : i32, i32
  }
}

</mosaic_0001>

<llo_original>
// kernel: tpu_custom_call.1
$region0: #{tpu_custom_call.1}
  #allocation0 [shape = 'u32[]', space=smem, size = 0x4, offset = 0x4, fixed_abs, tag = 'smem constant byte address 0x4 - core index']
  #allocation1 [shape = 'u32[144,128]{1,0:T(1,128)}', space=vmem, size = 0x12000, scoped, tag = 'internal scratch']
  %s0 = inlined_call_operand.hbm [shape: bf16[2,100], index: 0, kind: input, shape index: {}]
  %s1 = inlined_call_operand.hbm [shape: bf16[100,2048], index: 1, kind: input, shape index: {}]
  %s2 = inlined_call_operand.hbm [shape: f32[1,2048], index: 2, kind: input, shape index: {}]
  %s3 = inlined_call_operand.hbm [shape: f32[1,2048], index: 3, kind: input, shape index: {}]
  %s4 = inlined_call_operand.hbm [shape: bf16[2,2048], index: 4, kind: output, shape index: {}]
  %s5 = sld [smem:[#allocation0]]
  $region42: #{tpu_custom_call.1} parent=0
    _
  %s7 = ssub.s32 1, %s5
  %s8 = scalar_select 0, %s7, %s5
  $region1: #{tpu_custom_call.1} parent=0
    #allocation2 [shape = 'u8[512]{0}', space=vmem, size = 0x400, scoped, tag = 'input window, operand 0, single buffered']
    #allocation3 [shape = 's32[1]{0}', space=sflag, size = 0x4, scoped, tag = 'scoped memory for tpu_custom_call.1']
    #allocation4 [shape = 's32[1]{0}', space=sflag, size = 0x4, scoped, tag = 'scoped memory for tpu_custom_call.1']
    #allocation5 [shape = 'u8[425984]{0}', space=vmem, size = 0x68000, scoped, tag = 'input window, operand 1, single buffered']
    #allocation6 [shape = 's32[1]{0}', space=sflag, size = 0x4, scoped, tag = 'scoped memory for tpu_custom_call.1']
    #allocation7 [shape = 'u8[8192]{0}', space=vmem, size = 0x2000, scoped, tag = 'input window, operand 2, single buffered']
    #allocation8 [shape = 'u8[8192]{0}', space=vmem, size = 0x2000, scoped, tag = 'input window, operand 3, single buffered']
    #allocation9 [shape = 's32[1]{0}', space=sflag, size = 0x4, scoped, tag = 'scoped memory for tpu_custom_call.1']
    #allocation10 [shape = 'u8[8192]{0}', space=vmem, size = 0x2000, scoped, tag = 'output window, operand 0, single buffered']
    %9 = vsyncpa [#allocation3], 0
    %10 = vsyncpa [#allocation6], 0
    %11 = vsyncpa [#allocation9], 0
    %12 = vsyncpa [#allocation4], 0
    // Predicated region
    $region2: #{tpu_custom_call.1} parent=1 // pred_check
      _
    $region3: #{tpu_custom_call.1} parent=1 // pred_check_branch
      %14 = sbr.rel (0) target = $region5
    $region4: #{tpu_custom_call.1} parent=1 // pred_region
      %s16 = ssub.s32 16, 16
      %17 = vsyncadd [#allocation3], %s16
      %s19 = sshll.u32 [#allocation2], 4
      %s20 = int_to_ptr.vmem [resolvable:$true] %s19
      %22 = dma.hbm_to_vmem [thread:$0]  %s0, 16, %s20, [#allocation3]
    $region5: #{tpu_custom_call.1} parent=1 // pred_fallthru
      _
    // Predicated region
    $region6: #{tpu_custom_call.1} parent=1 // pred_check
      _
    $region7: #{tpu_custom_call.1} parent=1 // pred_check_branch
      %24 = sbr.rel (0) target = $region9
    $region8: #{tpu_custom_call.1} parent=1 // pred_region
      %s26 = ssub.s32 13312, 13312
      %27 = vsyncadd [#allocation6], %s26
      %s28 = sshll.u32 [#allocation5], 4
      %s29 = int_to_ptr.vmem [resolvable:$true] %s28
      %34 = dma.hbm_to_vmem [thread:$0]  %s1, 13312, %s29, [#allocation6], 1024, 1024, 64
    $region9: #{tpu_custom_call.1} parent=1 // pred_fallthru
      _
    // Predicated region
    $region10: #{tpu_custom_call.1} parent=1 // pred_check
      _
    $region11: #{tpu_custom_call.1} parent=1 // pred_check_branch
      %36 = sbr.rel (0) target = $region13
    $region12: #{tpu_custom_call.1} parent=1 // pred_region
      %s38 = ssub.s32 256, 256
      %39 = vsyncadd [#allocation6], %s38
      %s41 = sshll.u32 [#allocation7], 4
      %s42 = int_to_ptr.vmem [resolvable:$true] %s41
      %44 = dma.hbm_to_vmem [thread:$0]  %s2, 256, %s42, [#allocation6]
    $region13: #{tpu_custom_call.1} parent=1 // pred_fallthru
      _
    // Predicated region
    $region14: #{tpu_custom_call.1} parent=1 // pred_check
      _
    $region15: #{tpu_custom_call.1} parent=1 // pred_check_branch
      %46 = sbr.rel (0) target = $region17
    $region16: #{tpu_custom_call.1} parent=1 // pred_region
      %s48 = ssub.s32 256, 256
      %49 = vsyncadd [#allocation9], %s48
      %s51 = sshll.u32 [#allocation8], 4
      %s52 = int_to_ptr.vmem [resolvable:$true] %s51
      %54 = dma.hbm_to_vmem [thread:$0]  %s3, 256, %s52, [#allocation9]
    $region17: #{tpu_custom_call.1} parent=1 // pred_fallthru
      _
    // Predicated region
    $region18: #{tpu_custom_call.1} parent=1 // pred_check
      _
    $region19: #{tpu_custom_call.1} parent=1 // pred_check_branch
      %56 = sbr.rel (0) target = $region21
    $region20: #{tpu_custom_call.1} parent=1 // pred_region
      %57 = dma.done [#allocation3], 16
    $region21: #{tpu_custom_call.1} parent=1 // pred_fallthru
      _
    // Predicated region
    $region22: #{tpu_custom_call.1} parent=1 // pred_check
      _
    $region23: #{tpu_custom_call.1} parent=1 // pred_check_branch
      %59 = sbr.rel (0) target = $region25
    $region24: #{tpu_custom_call.1} parent=1 // pred_region
      %60 = dma.done [#allocation6], 13312
    $region25: #{tpu_custom_call.1} parent=1 // pred_fallthru
      _
    // Predicated region
    $region26: #{tpu_custom_call.1} parent=1 // pred_check
      _
    $region27: #{tpu_custom_call.1} parent=1 // pred_check_branch
      %62 = sbr.rel (0) target = $region29
    $region28: #{tpu_custom_call.1} parent=1 // pred_region
      %63 = dma.done [#allocation6], 256
    $region29: #{tpu_custom_call.1} parent=1 // pred_fallthru
      _
    // Predicated region
    $region30: #{tpu_custom_call.1} parent=1 // pred_check
      _
    $region31: #{tpu_custom_call.1} parent=1 // pred_check_branch
      %65 = sbr.rel (0) target = $region33
    $region32: #{tpu_custom_call.1} parent=1 // pred_region
      %66 = dma.done [#allocation9], 256
    $region33: #{tpu_custom_call.1} parent=1 // pred_fallthru
      _
    %v68 = vld [vmem:[#allocation2] sm:$0x1]
    %v69 = vld [vmem:[#allocation5] sm:$0xff]
    %v70 = vld [vmem:[#allocation5 + $0x8] sm:$0xff]
    %v71 = vld [vmem:[#allocation5 + $0x10] sm:$0xff]
    %v72 = vld [vmem:[#allocation5 + $0x18] sm:$0xff]
    %v73 = vld [vmem:[#allocation5 + $0x20] sm:$0xff]
    %v74 = vld [vmem:[#allocation5 + $0x28] sm:$0xff]
    %v75 = vld [vmem:[#allocation5 + $0x30] sm:$0xff]
    %v76 = vld [vmem:[#allocation5 + $0x38] sm:$0xff]
    %v77 = vld [vmem:[#allocation5 + $0x40] sm:$0xff]
    %v78 = vld [vmem:[#allocation5 + $0x48] sm:$0xff]
    %v79 = vld [vmem:[#allocation5 + $0x50] sm:$0xff]
    %v80 = vld [vmem:[#allocation5 + $0x58] sm:$0xff]
    %v81 = vld [vmem:[#allocation5 + $0x60] sm:$0xff]
    %v82 = vld [vmem:[#allocation5 + $0x68] sm:$0xff]
    %v83 = vld [vmem:[#allocation5 + $0x70] sm:$0xff]
    %v84 = vld [vmem:[#allocation5 + $0x78] sm:$0xff]
    %v85 = vld [vmem:[#allocation5 + $0x80] sm:$0xff]
    %v86 = vld [vmem:[#allocation5 + $0x88] sm:$0xff]
    %v87 = vld [vmem:[#allocation5 + $0x90] sm:$0xff]
    %v88 = vld [vmem:[#allocation5 + $0x98] sm:$0xff]
    %v89 = vld [vmem:[#allocation5 + $0xa0] sm:$0xff]
    %v90 = vld [vmem:[#allocation5 + $0xa8] sm:$0xff]
    %v91 = vld [vmem:[#allocation5 + $0xb0] sm:$0xff]
    %v92 = vld [vmem:[#allocation5 + $0xb8] sm:$0xff]
    %v93 = vld [vmem:[#allocation5 + $0xc0] sm:$0xff]
    %v94 = vld [vmem:[#allocation5 + $0xc8] sm:$0xff]
    %v95 = vld [vmem:[#allocation5 + $0xd0] sm:$0xff]
    %v96 = vld [vmem:[#allocation5 + $0xd8] sm:$0xff]
    %v97 = vld [vmem:[#allocation5 + $0xe0] sm:$0xff]
    %v98 = vld [vmem:[#allocation5 + $0xe8] sm:$0xff]
    %v99 = vld [vmem:[#allocation5 + $0xf0] sm:$0xff]
    %v100 = vld [vmem:[#allocation5 + $0xf8] sm:$0xff]
    %v101 = vld [vmem:[#allocation5 + $0x100] sm:$0xff]
    %v102 = vld [vmem:[#allocation5 + $0x108] sm:$0xff]
    %v103 = vld [vmem:[#allocation5 + $0x110] sm:$0xff]
    %v104 = vld [vmem:[#allocation5 + $0x118] sm:$0xff]
    %v105 = vld [vmem:[#allocation5 + $0x120] sm:$0xff]
    %v106 = vld [vmem:[#allocation5 + $0x128] sm:$0xff]
    %v107 = vld [vmem:[#allocation5 + $0x130] sm:$0xff]
    %v108 = vld [vmem:[#allocation5 + $0x138] sm:$0xff]
    %v109 = vld [vmem:[#allocation5 + $0x140] sm:$0xff]
    %v110 = vld [vmem:[#allocation5 + $0x148] sm:$0xff]
    %v111 = vld [vmem:[#allocation5 + $0x150] sm:$0xff]
    %v112 = vld [vmem:[#allocation5 + $0x158] sm:$0xff]
    %v113 = vld [vmem:[#allocation5 + $0x160] sm:$0xff]
    %v114 = vld [vmem:[#allocation5 + $0x168] sm:$0xff]
    %v115 = vld [vmem:[#allocation5 + $0x170] sm:$0xff]
    %v116 = vld [vmem:[#allocation5 + $0x178] sm:$0xff]
    %v117 = vld [vmem:[#allocation5 + $0x180] sm:$0xff]
    %v118 = vld [vmem:[#allocation5 + $0x188] sm:$0xff]
    %v119 = vld [vmem:[#allocation5 + $0x190] sm:$0xff]
    %v120 = vld [vmem:[#allocation5 + $0x198] sm:$0xff]
    %v121 = vld [vmem:[#allocation5 + $0x1a0] sm:$0xff]
    %v122 = vld [vmem:[#allocation5 + $0x1a8] sm:$0xff]
    %v123 = vld [vmem:[#allocation5 + $0x1b0] sm:$0xff]
    %v124 = vld [vmem:[#allocation5 + $0x1b8] sm:$0xff]
    %v125 = vld [vmem:[#allocation5 + $0x1c0] sm:$0xff]
    %v126 = vld [vmem:[#allocation5 + $0x1c8] sm:$0xff]
    %v127 = vld [vmem:[#allocation5 + $0x1d0] sm:$0xff]
    %v128 = vld [vmem:[#allocation5 + $0x1d8] sm:$0xff]
    %v129 = vld [vmem:[#allocation5 + $0x1e0] sm:$0xff]
    %v130 = vld [vmem:[#allocation5 + $0x1e8] sm:$0xff]
    %v131 = vld [vmem:[#allocation5 + $0x1f0] sm:$0xff]
    %v132 = vld [vmem:[#allocation5 + $0x1f8] sm:$0xff]
    %v133 = vld [vmem:[#allocation5 + $0x200] sm:$0xff]
    %v134 = vld [vmem:[#allocation5 + $0x208] sm:$0xff]
    %v135 = vld [vmem:[#allocation5 + $0x210] sm:$0xff]
    %v136 = vld [vmem:[#allocation5 + $0x218] sm:$0xff]
    %v137 = vld [vmem:[#allocation5 + $0x220] sm:$0xff]
    %v138 = vld [vmem:[#allocation5 + $0x228] sm:$0xff]
    %v139 = vld [vmem:[#allocation5 + $0x230] sm:$0xff]
    %v140 = vld [vmem:[#allocation5 + $0x238] sm:$0xff]
    %v141 = vld [vmem:[#allocation5 + $0x240] sm:$0xff]
    %v142 = vld [vmem:[#allocation5 + $0x248] sm:$0xff]
    %v143 = vld [vmem:[#allocation5 + $0x250] sm:$0xff]
    %v144 = vld [vmem:[#allocation5 + $0x258] sm:$0xff]
    %v145 = vld [vmem:[#allocation5 + $0x260] sm:$0xff]
    %v146 = vld [vmem:[#allocation5 + $0x268] sm:$0xff]
    %v147 = vld [vmem:[#allocation5 + $0x270] sm:$0xff]
    %v148 = vld [vmem:[#allocation5 + $0x278] sm:$0xff]
    %v149 = vld [vmem:[#allocation5 + $0x280] sm:$0xff]
    %v150 = vld [vmem:[#allocation5 + $0x288] sm:$0xff]
    %v151 = vld [vmem:[#allocation5 + $0x290] sm:$0xff]
    %v152 = vld [vmem:[#allocation5 + $0x298] sm:$0xff]
    %v153 = vld [vmem:[#allocation5 + $0x2a0] sm:$0xff]
    %v154 = vld [vmem:[#allocation5 + $0x2a8] sm:$0xff]
    %v155 = vld [vmem:[#allocation5 + $0x2b0] sm:$0xff]
    %v156 = vld [vmem:[#allocation5 + $0x2b8] sm:$0xff]
    %v157 = vld [vmem:[#allocation5 + $0x2c0] sm:$0xff]
    %v158 = vld [vmem:[#allocation5 + $0x2c8] sm:$0xff]
    %v159 = vld [vmem:[#allocation5 + $0x2d0] sm:$0xff]
    %v160 = vld [vmem:[#allocation5 + $0x2d8] sm:$0xff]
    %v161 = vld [vmem:[#allocation5 + $0x2e0] sm:$0xff]
    %v162 = vld [vmem:[#allocation5 + $0x2e8] sm:$0xff]
    %v163 = vld [vmem:[#allocation5 + $0x2f0] sm:$0xff]
    %v164 = vld [vmem:[#allocation5 + $0x2f8] sm:$0xff]
    %v165 = vld [vmem:[#allocation5 + $0x300] sm:$0x33]
    %v166 = vld [vmem:[#allocation5 + $0x308] sm:$0x33]
    %v167 = vld [vmem:[#allocation5 + $0x310] sm:$0x33]
    %v168 = vld [vmem:[#allocation5 + $0x318] sm:$0x33]
    %v169 = vld [vmem:[#allocation5 + $0x320] sm:$0x33]
    %v170 = vld [vmem:[#allocation5 + $0x328] sm:$0x33]
    %v171 = vld [vmem:[#allocation5 + $0x330] sm:$0x33]
    %v172 = vld [vmem:[#allocation5 + $0x338] sm:$0x33]
    %v277 = vunpack.c.l.b16 %v69
    %v278 = vunpack.c.h.b16 %v69
    %v279 = vunpack.c.l.b16 %v70
    %v280 = vunpack.c.h.b16 %v70
    %v281 = vunpack.c.l.b16 %v71
    %v282 = vunpack.c.h.b16 %v71
    %v283 = vunpack.c.l.b16 %v72
    %v284 = vunpack.c.h.b16 %v72
    %v285 = vunpack.c.l.b16 %v73
    %v286 = vunpack.c.h.b16 %v73
    %v287 = vunpack.c.l.b16 %v74
    %v288 = vunpack.c.h.b16 %v74
    %v289 = vunpack.c.l.b16 %v75
    %v290 = vunpack.c.h.b16 %v75
    %v291 = vunpack.c.l.b16 %v76
    %v292 = vunpack.c.h.b16 %v76
    %v293 = vunpack.c.l.b16 %v77
    %v294 = vunpack.c.h.b16 %v77
    %v295 = vunpack.c.l.b16 %v78
    %v296 = vunpack.c.h.b16 %v78
    %v297 = vunpack.c.l.b16 %v79
    %v298 = vunpack.c.h.b16 %v79
    %v299 = vunpack.c.l.b16 %v80
    %v300 = vunpack.c.h.b16 %v80
    %v301 = vunpack.c.l.b16 %v81
    %v302 = vunpack.c.h.b16 %v81
    %v303 = vunpack.c.l.b16 %v82
    %v304 = vunpack.c.h.b16 %v82
    %v305 = vunpack.c.l.b16 %v83
    %v306 = vunpack.c.h.b16 %v83
    %v307 = vunpack.c.l.b16 %v84
    %v308 = vunpack.c.h.b16 %v84
    %v309 = vunpack.c.l.b16 %v85
    %v310 = vunpack.c.h.b16 %v85
    %v311 = vunpack.c.l.b16 %v86
    %v312 = vunpack.c.h.b16 %v86
    %v313 = vunpack.c.l.b16 %v87
    %v314 = vunpack.c.h.b16 %v87
    %v315 = vunpack.c.l.b16 %v88
    %v316 = vunpack.c.h.b16 %v88
    %v317 = vunpack.c.l.b16 %v89
    %v318 = vunpack.c.h.b16 %v89
    %v319 = vunpack.c.l.b16 %v90
    %v320 = vunpack.c.h.b16 %v90
    %v321 = vunpack.c.l.b16 %v91
    %v322 = vunpack.c.h.b16 %v91
    %v323 = vunpack.c.l.b16 %v92
    %v324 = vunpack.c.h.b16 %v92
    %v325 = vunpack.c.l.b16 %v93
    %v326 = vunpack.c.h.b16 %v93
    %v327 = vunpack.c.l.b16 %v94
    %v328 = vunpack.c.h.b16 %v94
    %v329 = vunpack.c.l.b16 %v95
    %v330 = vunpack.c.h.b16 %v95
    %v331 = vunpack.c.l.b16 %v96
    %v332 = vunpack.c.h.b16 %v96
    %v333 = vunpack.c.l.b16 %v97
    %v334 = vunpack.c.h.b16 %v97
    %v335 = vunpack.c.l.b16 %v98
    %v336 = vunpack.c.h.b16 %v98
    %v337 = vunpack.c.l.b16 %v99
    %v338 = vunpack.c.h.b16 %v99
    %v339 = vunpack.c.l.b16 %v100
    %v340 = vunpack.c.h.b16 %v100
    %v341 = vunpack.c.l.b16 %v101
    %v342 = vunpack.c.h.b16 %v101
    %v343 = vunpack.c.l.b16 %v102
    %v344 = vunpack.c.h.b16 %v102
    %v345 = vunpack.c.l.b16 %v103
    %v346 = vunpack.c.h.b16 %v103
    %v347 = vunpack.c.l.b16 %v104
    %v348 = vunpack.c.h.b16 %v104
    %v349 = vunpack.c.l.b16 %v105
    %v350 = vunpack.c.h.b16 %v105
    %v351 = vunpack.c.l.b16 %v106
    %v352 = vunpack.c.h.b16 %v106
    %v353 = vunpack.c.l.b16 %v107
    %v354 = vunpack.c.h.b16 %v107
    %v355 = vunpack.c.l.b16 %v108
    %v356 = vunpack.c.h.b16 %v108
    %v357 = vunpack.c.l.b16 %v109
    %v358 = vunpack.c.h.b16 %v109
    %v359 = vunpack.c.l.b16 %v110
    %v360 = vunpack.c.h.b16 %v110
    %v361 = vunpack.c.l.b16 %v111
    %v362 = vunpack.c.h.b16 %v111
    %v363 = vunpack.c.l.b16 %v112
    %v364 = vunpack.c.h.b16 %v112
    %v365 = vunpack.c.l.b16 %v113
    %v366 = vunpack.c.h.b16 %v113
    %v367 = vunpack.c.l.b16 %v114
    %v368 = vunpack.c.h.b16 %v114
    %v369 = vunpack.c.l.b16 %v115
    %v370 = vunpack.c.h.b16 %v115
    %v371 = vunpack.c.l.b16 %v116
    %v372 = vunpack.c.h.b16 %v116
    %v373 = vunpack.c.l.b16 %v117
    %v374 = vunpack.c.h.b16 %v117
    %v375 = vunpack.c.l.b16 %v118
    %v376 = vunpack.c.h.b16 %v118
    %v377 = vunpack.c.l.b16 %v119
    %v378 = vunpack.c.h.b16 %v119
    %v379 = vunpack.c.l.b16 %v120
    %v380 = vunpack.c.h.b16 %v120
    %v381 = vunpack.c.l.b16 %v121
    %v382 = vunpack.c.h.b16 %v121
    %v383 = vunpack.c.l.b16 %v122
    %v384 = vunpack.c.h.b16 %v122
    %v385 = vunpack.c.l.b16 %v123
    %v386 = vunpack.c.h.b16 %v123
    %v387 = vunpack.c.l.b16 %v124
    %v388 = vunpack.c.h.b16 %v124
    %v389 = vunpack.c.l.b16 %v125
    %v390 = vunpack.c.h.b16 %v125
    %v391 = vunpack.c.l.b16 %v126
    %v392 = vunpack.c.h.b16 %v126
    %v393 = vunpack.c.l.b16 %v127
    %v394 = vunpack.c.h.b16 %v127
    %v395 = vunpack.c.l.b16 %v128
    %v396 = vunpack.c.h.b16 %v128
    %v397 = vunpack.c.l.b16 %v129
    %v398 = vunpack.c.h.b16 %v129
    %v399 = vunpack.c.l.b16 %v130
    %v400 = vunpack.c.h.b16 %v130
    %v401 = vunpack.c.l.b16 %v131
    %v402 = vunpack.c.h.b16 %v131
    %v403 = vunpack.c.l.b16 %v132
    %v404 = vunpack.c.h.b16 %v132
    %v405 = vunpack.c.l.b16 %v133
    %v406 = vunpack.c.h.b16 %v133
    %v407 = vunpack.c.l.b16 %v134
    %v408 = vunpack.c.h.b16 %v134
    %v409 = vunpack.c.l.b16 %v135
    %v410 = vunpack.c.h.b16 %v135
    %v411 = vunpack.c.l.b16 %v136
    %v412 = vunpack.c.h.b16 %v136
    %v413 = vunpack.c.l.b16 %v137
    %v414 = vunpack.c.h.b16 %v137
    %v415 = vunpack.c.l.b16 %v138
    %v416 = vunpack.c.h.b16 %v138
    %v417 = vunpack.c.l.b16 %v139
    %v418 = vunpack.c.h.b16 %v139
    %v419 = vunpack.c.l.b16 %v140
    %v420 = vunpack.c.h.b16 %v140
    %v421 = vunpack.c.l.b16 %v141
    %v422 = vunpack.c.h.b16 %v141
    %v423 = vunpack.c.l.b16 %v142
    %v424 = vunpack.c.h.b16 %v142
    %v425 = vunpack.c.l.b16 %v143
    %v426 = vunpack.c.h.b16 %v143
    %v427 = vunpack.c.l.b16 %v144
    %v428 = vunpack.c.h.b16 %v144
    %v429 = vunpack.c.l.b16 %v145
    %v430 = vunpack.c.h.b16 %v145
    %v431 = vunpack.c.l.b16 %v146
    %v432 = vunpack.c.h.b16 %v146
    %v433 = vunpack.c.l.b16 %v147
    %v434 = vunpack.c.h.b16 %v147
    %v435 = vunpack.c.l.b16 %v148
    %v436 = vunpack.c.h.b16 %v148
    %v437 = vunpack.c.l.b16 %v149
    %v438 = vunpack.c.h.b16 %v149
    %v439 = vunpack.c.l.b16 %v150
    %v440 = vunpack.c.h.b16 %v150
    %v441 = vunpack.c.l.b16 %v151
    %v442 = vunpack.c.h.b16 %v151
    %v443 = vunpack.c.l.b16 %v152
    %v444 = vunpack.c.h.b16 %v152
    %v445 = vunpack.c.l.b16 %v153
    %v446 = vunpack.c.h.b16 %v153
    %v447 = vunpack.c.l.b16 %v154
    %v448 = vunpack.c.h.b16 %v154
    %v449 = vunpack.c.l.b16 %v155
    %v450 = vunpack.c.h.b16 %v155
    %v451 = vunpack.c.l.b16 %v156
    %v452 = vunpack.c.h.b16 %v156
    %v453 = vunpack.c.l.b16 %v157
    %v454 = vunpack.c.h.b16 %v157
    %v455 = vunpack.c.l.b16 %v158
    %v456 = vunpack.c.h.b16 %v158
    %v457 = vunpack.c.l.b16 %v159
    %v458 = vunpack.c.h.b16 %v159
    %v459 = vunpack.c.l.b16 %v160
    %v460 = vunpack.c.h.b16 %v160
    %v461 = vunpack.c.l.b16 %v161
    %v462 = vunpack.c.h.b16 %v161
    %v463 = vunpack.c.l.b16 %v162
    %v464 = vunpack.c.h.b16 %v162
    %v465 = vunpack.c.l.b16 %v163
    %v466 = vunpack.c.h.b16 %v163
    %v467 = vunpack.c.l.b16 %v164
    %v468 = vunpack.c.h.b16 %v164
    %v469 = vunpack.c.l.b16 %v165
    %v470 = vunpack.c.h.b16 %v165
    %v471 = vunpack.c.l.b16 %v166
    %v472 = vunpack.c.h.b16 %v166
    %v473 = vunpack.c.l.b16 %v167
    %v474 = vunpack.c.h.b16 %v167
    %v475 = vunpack.c.l.b16 %v168
    %v476 = vunpack.c.h.b16 %v168
    %v477 = vunpack.c.l.b16 %v169
    %v478 = vunpack.c.h.b16 %v169
    %v479 = vunpack.c.l.b16 %v170
    %v480 = vunpack.c.h.b16 %v170
    %v481 = vunpack.c.l.b16 %v171
    %v482 = vunpack.c.h.b16 %v171
    %v483 = vunpack.c.l.b16 %v172
    %v484 = vunpack.c.h.b16 %v172
    %v485 = vpack.c.b16 %v293, %v277
    %v486 = vpack.c.b16 %v294, %v278
    %v487 = vpack.c.b16 %v295, %v279
    %v488 = vpack.c.b16 %v296, %v280
    %v489 = vpack.c.b16 %v297, %v281
    %v490 = vpack.c.b16 %v298, %v282
    %v491 = vpack.c.b16 %v299, %v283
    %v492 = vpack.c.b16 %v300, %v284
    %v493 = vpack.c.b16 %v301, %v285
    %v494 = vpack.c.b16 %v302, %v286
    %v495 = vpack.c.b16 %v303, %v287
    %v496 = vpack.c.b16 %v304, %v288
    %v497 = vpack.c.b16 %v305, %v289
    %v498 = vpack.c.b16 %v306, %v290
    %v499 = vpack.c.b16 %v307, %v291
    %v500 = vpack.c.b16 %v308, %v292
    %v501 = vpack.c.b16 %v325, %v309
    %v502 = vpack.c.b16 %v326, %v310
    %v503 = vpack.c.b16 %v327, %v311
    %v504 = vpack.c.b16 %v328, %v312
    %v505 = vpack.c.b16 %v329, %v313
    %v506 = vpack.c.b16 %v330, %v314
    %v507 = vpack.c.b16 %v331, %v315
    %v508 = vpack.c.b16 %v332, %v316
    %v509 = vpack.c.b16 %v333, %v317
    %v510 = vpack.c.b16 %v334, %v318
    %v511 = vpack.c.b16 %v335, %v319
    %v512 = vpack.c.b16 %v336, %v320
    %v513 = vpack.c.b16 %v337, %v321
    %v514 = vpack.c.b16 %v338, %v322
    %v515 = vpack.c.b16 %v339, %v323
    %v516 = vpack.c.b16 %v340, %v324
    %v517 = vpack.c.b16 %v357, %v341
    %v518 = vpack.c.b16 %v358, %v342
    %v519 = vpack.c.b16 %v359, %v343
    %v520 = vpack.c.b16 %v360, %v344
    %v521 = vpack.c.b16 %v361, %v345
    %v522 = vpack.c.b16 %v362, %v346
    %v523 = vpack.c.b16 %v363, %v347
    %v524 = vpack.c.b16 %v364, %v348
    %v525 = vpack.c.b16 %v365, %v349
    %v526 = vpack.c.b16 %v366, %v350
    %v527 = vpack.c.b16 %v367, %v351
    %v528 = vpack.c.b16 %v368, %v352
    %v529 = vpack.c.b16 %v369, %v353
    %v530 = vpack.c.b16 %v370, %v354
    %v531 = vpack.c.b16 %v371, %v355
    %v532 = vpack.c.b16 %v372, %v356
    %v533 = vpack.c.b16 %v389, %v373
    %v534 = vpack.c.b16 %v390, %v374
    %v535 = vpack.c.b16 %v391, %v375
    %v536 = vpack.c.b16 %v392, %v376
    %v537 = vpack.c.b16 %v393, %v377
    %v538 = vpack.c.b16 %v394, %v378
    %v539 = vpack.c.b16 %v395, %v379
    %v540 = vpack.c.b16 %v396, %v380
    %v541 = vpack.c.b16 %v397, %v381
    %v542 = vpack.c.b16 %v398, %v382
    %v543 = vpack.c.b16 %v399, %v383
    %v544 = vpack.c.b16 %v400, %v384
    %v545 = vpack.c.b16 %v401, %v385
    %v546 = vpack.c.b16 %v402, %v386
    %v547 = vpack.c.b16 %v403, %v387
    %v548 = vpack.c.b16 %v404, %v388
    %v549 = vpack.c.b16 %v421, %v405
    %v550 = vpack.c.b16 %v422, %v406
    %v551 = vpack.c.b16 %v423, %v407
    %v552 = vpack.c.b16 %v424, %v408
    %v553 = vpack.c.b16 %v425, %v409
    %v554 = vpack.c.b16 %v426, %v410
    %v555 = vpack.c.b16 %v427, %v411
    %v556 = vpack.c.b16 %v428, %v412
    %v557 = vpack.c.b16 %v429, %v413
    %v558 = vpack.c.b16 %v430, %v414
    %v559 = vpack.c.b16 %v431, %v415
    %v560 = vpack.c.b16 %v432, %v416
    %v561 = vpack.c.b16 %v433, %v417
    %v562 = vpack.c.b16 %v434, %v418
    %v563 = vpack.c.b16 %v435, %v419
    %v564 = vpack.c.b16 %v436, %v420
    %v565 = vpack.c.b16 %v453, %v437
    %v566 = vpack.c.b16 %v454, %v438
    %v567 = vpack.c.b16 %v455, %v439
    %v568 = vpack.c.b16 %v456, %v440
    %v569 = vpack.c.b16 %v457, %v441
    %v570 = vpack.c.b16 %v458, %v442
    %v571 = vpack.c.b16 %v459, %v443
    %v572 = vpack.c.b16 %v460, %v444
    %v573 = vpack.c.b16 %v461, %v445
    %v574 = vpack.c.b16 %v462, %v446
    %v575 = vpack.c.b16 %v463, %v447
    %v576 = vpack.c.b16 %v464, %v448
    %v577 = vpack.c.b16 %v465, %v449
    %v578 = vpack.c.b16 %v466, %v450
    %v579 = vpack.c.b16 %v467, %v451
    %v580 = vpack.c.b16 %v468, %v452
    %v581 = vpack.c.b16 %v469, %v469
    %v582 = vpack.c.b16 %v470, %v470
    %v583 = vpack.c.b16 %v471, %v471
    %v584 = vpack.c.b16 %v472, %v472
    %v585 = vpack.c.b16 %v473, %v473
    %v586 = vpack.c.b16 %v474, %v474
    %v587 = vpack.c.b16 %v475, %v475
    %v588 = vpack.c.b16 %v476, %v476
    %v589 = vpack.c.b16 %v477, %v477
    %v590 = vpack.c.b16 %v478, %v478
    %v591 = vpack.c.b16 %v479, %v479
    %v592 = vpack.c.b16 %v480, %v480
    %v593 = vpack.c.b16 %v481, %v481
    %v594 = vpack.c.b16 %v482, %v482
    %v595 = vpack.c.b16 %v483, %v483
    %v596 = vpack.c.b16 %v484, %v484
    %vm693 = vcmask 818176
    %v695 = vsel %vm693, %v68, 0
    %vm697 = vcmask 1041408
    %v699 = vsel %vm697, %v581, 0
    %v702 = vsel %vm697, %v582, 0
    %v705 = vsel %vm697, %v583, 0
    %v708 = vsel %vm697, %v584, 0
    %v711 = vsel %vm697, %v585, 0
    %v714 = vsel %vm697, %v586, 0
    %v717 = vsel %vm697, %v587, 0
    %v720 = vsel %vm697, %v588, 0
    %v723 = vsel %vm697, %v589, 0
    %v726 = vsel %vm697, %v590, 0
    %v729 = vsel %vm697, %v591, 0
    %v732 = vsel %vm697, %v592, 0
    %v735 = vsel %vm697, %v593, 0
    %v738 = vsel %vm697, %v594, 0
    %v741 = vsel %vm697, %v595, 0
    %v744 = vsel %vm697, %v596, 0
    %746 = vmatprep.subr.bf16.mxu0 %v486
    %747 = vmatpush1.bf16.msra.mxu0 %v485
    %748 = vmatprep.subr.bf16.mxu0 %v502
    %749 = vmatpush1.bf16.msra.mxu0 %v501
    %750 = vmatprep.subr.bf16.mxu0 %v518
    %751 = vmatpush1.bf16.msra.mxu0 %v517
    %752 = vmatprep.subr.bf16.mxu0 %v534
    %753 = vmatpush1.bf16.msra.mxu0 %v533
    %754 = vmatprep.subr.bf16.mxu0 %v550
    %755 = vmatpush1.bf16.msra.mxu0 %v549
    %756 = vmatprep.subr.bf16.mxu0 %v566
    %757 = vmatpush1.bf16.msra.mxu0 %v565
    %758 = vmatprep.subr.bf16.mxu0 %v702
    %759 = vmatpush1.bf16.msra.mxu0 %v699
    %760 = vmatprep.subr.bf16.mxu0 0
    %761 = vmatpush1.bf16.msra.mxu0 0
    %762 = vmatprep.subr.bf16.mxu0 0
    %763 = vmatpush1.bf16.msra.mxu0 0
    %764 = vmatprep.subr.bf16.mxu0 0
    %765 = vmatpush1.bf16.msra.mxu0 0
    %766 = vmatprep.subr.bf16.mxu0 0
    %767 = vmatpush1.bf16.msra.mxu0 0
    %768 = vmatprep.subr.bf16.mxu0 0
    %769 = vmatpush1.bf16.msra.mxu0 0
    %770 = vmatprep.subr.bf16.mxu0 0
    %771 = vmatpush1.bf16.msra.mxu0 0
    %772 = vmatprep.subr.bf16.mxu0 0
    %773 = vmatpush1.bf16.msra.mxu0 0
    %774 = vmatprep.subr.bf16.mxu0 0
    %775 = vmatpush1.bf16.msra.mxu0 0
    %776 = vmatprep.subr.bf16.mxu0 0
    %777 = vmatpush1.bf16.msra.mxu0 0
    %778 = vmatprep.mubr.bf16.mxu0 0
    %779 = vmatmul.mubr.bf16.gmra.mrb[0].mxu0 %v695
    %v780 = vpop.f32.mrb[0].mxu0
    %v781 = vadd.f32 0.0, %v780
    %v782 = vpop.f32.mrb[0].mxu0
    %v783 = vadd.f32 0.0, %v782
    %v784 = vpop.f32.mrb[0].mxu0
    %v785 = vpop.f32.mrb[0].mxu0
    %786 = vdwg.mxu0
    %787 = vmatprep.subr.bf16.mxu0 %v488
    %788 = vmatpush1.bf16.msra.mxu0 %v487
    %789 = vmatprep.subr.bf16.mxu0 %v504
    %790 = vmatpush1.bf16.msra.mxu0 %v503
    %791 = vmatprep.subr.bf16.mxu0 %v520
    %792 = vmatpush1.bf16.msra.mxu0 %v519
    %793 = vmatprep.subr.bf16.mxu0 %v536
    %794 = vmatpush1.bf16.msra.mxu0 %v535
    %795 = vmatprep.subr.bf16.mxu0 %v552
    %796 = vmatpush1.bf16.msra.mxu0 %v551
    %797 = vmatprep.subr.bf16.mxu0 %v568
    %798 = vmatpush1.bf16.msra.mxu0 %v567
    %799 = vmatprep.subr.bf16.mxu0 %v708
    %800 = vmatpush1.bf16.msra.mxu0 %v705
    %801 = vmatprep.subr.bf16.mxu0 0
    %802 = vmatpush1.bf16.msra.mxu0 0
    %803 = vmatprep.subr.bf16.mxu0 0
    %804 = vmatpush1.bf16.msra.mxu0 0
    %805 = vmatprep.subr.bf16.mxu0 0
    %806 = vmatpush1.bf16.msra.mxu0 0
    %807 = vmatprep.subr.bf16.mxu0 0
    %808 = vmatpush1.bf16.msra.mxu0 0
    %809 = vmatprep.subr.bf16.mxu0 0
    %810 = vmatpush1.bf16.msra.mxu0 0
    %811 = vmatprep.subr.bf16.mxu0 0
    %812 = vmatpush1.bf16.msra.mxu0 0
    %813 = vmatprep.subr.bf16.mxu0 0
    %814 = vmatpush1.bf16.msra.mxu0 0
    %815 = vmatprep.subr.bf16.mxu0 0
    %816 = vmatpush1.bf16.msra.mxu0 0
    %817 = vmatprep.subr.bf16.mxu0 0
    %818 = vmatpush1.bf16.msra.mxu0 0
    %819 = vmatprep.mubr.bf16.mxu0 0
    %820 = vmatmul.mubr.bf16.gmra.mrb[0].mxu0 %v695
    %v821 = vpop.f32.mrb[0].mxu0
    %v822 = vadd.f32 0.0, %v821
    %v823 = vpop.f32.mrb[0].mxu0
    %v824 = vadd.f32 0.0, %v823
    %v825 = vpop.f32.mrb[0].mxu0
    %v826 = vpop.f32.mrb[0].mxu0
    %827 = vdwg.mxu0
    %828 = vmatprep.subr.bf16.mxu0 %v490
    %829 = vmatpush1.bf16.msra.mxu0 %v489
    %830 = vmatprep.subr.bf16.mxu0 %v506
    %831 = vmatpush1.bf16.msra.mxu0 %v505
    %832 = vmatprep.subr.bf16.mxu0 %v522
    %833 = vmatpush1.bf16.msra.mxu0 %v521
    %834 = vmatprep.subr.bf16.mxu0 %v538
    %835 = vmatpush1.bf16.msra.mxu0 %v537
    %836 = vmatprep.subr.bf16.mxu0 %v554
    %837 = vmatpush1.bf16.msra.mxu0 %v553
    %838 = vmatprep.subr.bf16.mxu0 %v570
    %839 = vmatpush1.bf16.msra.mxu0 %v569
    %840 = vmatprep.subr.bf16.mxu0 %v714
    %841 = vmatpush1.bf16.msra.mxu0 %v711
    %842 = vmatprep.subr.bf16.mxu0 0
    %843 = vmatpush1.bf16.msra.mxu0 0
    %844 = vmatprep.subr.bf16.mxu0 0
    %845 = vmatpush1.bf16.msra.mxu0 0
    %846 = vmatprep.subr.bf16.mxu0 0
    %847 = vmatpush1.bf16.msra.mxu0 0
    %848 = vmatprep.subr.bf16.mxu0 0
    %849 = vmatpush1.bf16.msra.mxu0 0
    %850 = vmatprep.subr.bf16.mxu0 0
    %851 = vmatpush1.bf16.msra.mxu0 0
    %852 = vmatprep.subr.bf16.mxu0 0
    %853 = vmatpush1.bf16.msra.mxu0 0
    %854 = vmatprep.subr.bf16.mxu0 0
    %855 = vmatpush1.bf16.msra.mxu0 0
    %856 = vmatprep.subr.bf16.mxu0 0
    %857 = vmatpush1.bf16.msra.mxu0 0
    %858 = vmatprep.subr.bf16.mxu0 0
    %859 = vmatpush1.bf16.msra.mxu0 0
    %860 = vmatprep.mubr.bf16.mxu0 0
    %861 = vmatmul.mubr.bf16.gmra.mrb[0].mxu0 %v695
    %v862 = vpop.f32.mrb[0].mxu0
    %v863 = vadd.f32 0.0, %v862
    %v864 = vpop.f32.mrb[0].mxu0
    %v865 = vadd.f32 0.0, %v864
    %v866 = vpop.f32.mrb[0].mxu0
    %v867 = vpop.f32.mrb[0].mxu0
    %868 = vdwg.mxu0
    %869 = vmatprep.subr.bf16.mxu0 %v492
    %870 = vmatpush1.bf16.msra.mxu0 %v491
    %871 = vmatprep.subr.bf16.mxu0 %v508
    %872 = vmatpush1.bf16.msra.mxu0 %v507
    %873 = vmatprep.subr.bf16.mxu0 %v524
    %874 = vmatpush1.bf16.msra.mxu0 %v523
    %875 = vmatprep.subr.bf16.mxu0 %v540
    %876 = vmatpush1.bf16.msra.mxu0 %v539
    %877 = vmatprep.subr.bf16.mxu0 %v556
    %878 = vmatpush1.bf16.msra.mxu0 %v555
    %879 = vmatprep.subr.bf16.mxu0 %v572
    %880 = vmatpush1.bf16.msra.mxu0 %v571
    %881 = vmatprep.subr.bf16.mxu0 %v720
    %882 = vmatpush1.bf16.msra.mxu0 %v717
    %883 = vmatprep.subr.bf16.mxu0 0
    %884 = vmatpush1.bf16.msra.mxu0 0
    %885 = vmatprep.subr.bf16.mxu0 0
    %886 = vmatpush1.bf16.msra.mxu0 0
    %887 = vmatprep.subr.bf16.mxu0 0
    %888 = vmatpush1.bf16.msra.mxu0 0
    %889 = vmatprep.subr.bf16.mxu0 0
    %890 = vmatpush1.bf16.msra.mxu0 0
    %891 = vmatprep.subr.bf16.mxu0 0
    %892 = vmatpush1.bf16.msra.mxu0 0
    %893 = vmatprep.subr.bf16.mxu0 0
    %894 = vmatpush1.bf16.msra.mxu0 0
    %895 = vmatprep.subr.bf16.mxu0 0
    %896 = vmatpush1.bf16.msra.mxu0 0
    %897 = vmatprep.subr.bf16.mxu0 0
    %898 = vmatpush1.bf16.msra.mxu0 0
    %899 = vmatprep.subr.bf16.mxu0 0
    %900 = vmatpush1.bf16.msra.mxu0 0
    %901 = vmatprep.mubr.bf16.mxu0 0
    %902 = vmatmul.mubr.bf16.gmra.mrb[0].mxu0 %v695
    %v903 = vpop.f32.mrb[0].mxu0
    %v904 = vadd.f32 0.0, %v903
    %v905 = vpop.f32.mrb[0].mxu0
    %v906 = vadd.f32 0.0, %v905
    %v907 = vpop.f32.mrb[0].mxu0
    %v908 = vpop.f32.mrb[0].mxu0
    %909 = vdwg.mxu0
    %910 = vmatprep.subr.bf16.mxu0 %v494
    %911 = vmatpush1.bf16.msra.mxu0 %v493
    %912 = vmatprep.subr.bf16.mxu0 %v510
    %913 = vmatpush1.bf16.msra.mxu0 %v509
    %914 = vmatprep.subr.bf16.mxu0 %v526
    %915 = vmatpush1.bf16.msra.mxu0 %v525
    %916 = vmatprep.subr.bf16.mxu0 %v542
    %917 = vmatpush1.bf16.msra.mxu0 %v541
    %918 = vmatprep.subr.bf16.mxu0 %v558
    %919 = vmatpush1.bf16.msra.mxu0 %v557
    %920 = vmatprep.subr.bf16.mxu0 %v574
    %921 = vmatpush1.bf16.msra.mxu0 %v573
    %922 = vmatprep.subr.bf16.mxu0 %v726
    %923 = vmatpush1.bf16.msra.mxu0 %v723
    %924 = vmatprep.subr.bf16.mxu0 0
    %925 = vmatpush1.bf16.msra.mxu0 0
    %926 = vmatprep.subr.bf16.mxu0 0
    %927 = vmatpush1.bf16.msra.mxu0 0
    %928 = vmatprep.subr.bf16.mxu0 0
    %929 = vmatpush1.bf16.msra.mxu0 0
    %930 = vmatprep.subr.bf16.mxu0 0
    %931 = vmatpush1.bf16.msra.mxu0 0
    %932 = vmatprep.subr.bf16.mxu0 0
    %933 = vmatpush1.bf16.msra.mxu0 0
    %934 = vmatprep.subr.bf16.mxu0 0
    %935 = vmatpush1.bf16.msra.mxu0 0
    %936 = vmatprep.subr.bf16.mxu0 0
    %937 = vmatpush1.bf16.msra.mxu0 0
    %938 = vmatprep.subr.bf16.mxu0 0
    %939 = vmatpush1.bf16.msra.mxu0 0
    %940 = vmatprep.subr.bf16.mxu0 0
    %941 = vmatpush1.bf16.msra.mxu0 0
    %942 = vmatprep.mubr.bf16.mxu0 0
    %943 = vmatmul.mubr.bf16.gmra.mrb[0].mxu0 %v695
    %v944 = vpop.f32.mrb[0].mxu0
    %v945 = vadd.f32 0.0, %v944
    %v946 = vpop.f32.mrb[0].mxu0
    %v947 = vadd.f32 0.0, %v946
    %v948 = vpop.f32.mrb[0].mxu0
    %v949 = vpop.f32.mrb[0].mxu0
    %950 = vdwg.mxu0
    %951 = vmatprep.subr.bf16.mxu0 %v496
    %952 = vmatpush1.bf16.msra.mxu0 %v495
    %953 = vmatprep.subr.bf16.mxu0 %v512
    %954 = vmatpush1.bf16.msra.mxu0 %v511
    %955 = vmatprep.subr.bf16.mxu0 %v528
    %956 = vmatpush1.bf16.msra.mxu0 %v527
    %957 = vmatprep.subr.bf16.mxu0 %v544
    %958 = vmatpush1.bf16.msra.mxu0 %v543
    %959 = vmatprep.subr.bf16.mxu0 %v560
    %960 = vmatpush1.bf16.msra.mxu0 %v559
    %961 = vmatprep.subr.bf16.mxu0 %v576
    %962 = vmatpush1.bf16.msra.mxu0 %v575
    %963 = vmatprep.subr.bf16.mxu0 %v732
    %964 = vmatpush1.bf16.msra.mxu0 %v729
    %965 = vmatprep.subr.bf16.mxu0 0
    %966 = vmatpush1.bf16.msra.mxu0 0
    %967 = vmatprep.subr.bf16.mxu0 0
    %968 = vmatpush1.bf16.msra.mxu0 0
    %969 = vmatprep.subr.bf16.mxu0 0
    %970 = vmatpush1.bf16.msra.mxu0 0
    %971 = vmatprep.subr.bf16.mxu0 0
    %972 = vmatpush1.bf16.msra.mxu0 0
    %973 = vmatprep.subr.bf16.mxu0 0
    %974 = vmatpush1.bf16.msra.mxu0 0
    %975 = vmatprep.subr.bf16.mxu0 0
    %976 = vmatpush1.bf16.msra.mxu0 0
    %977 = vmatprep.subr.bf16.mxu0 0
    %978 = vmatpush1.bf16.msra.mxu0 0
    %979 = vmatprep.subr.bf16.mxu0 0
    %980 = vmatpush1.bf16.msra.mxu0 0
    %981 = vmatprep.subr.bf16.mxu0 0
    %982 = vmatpush1.bf16.msra.mxu0 0
    %983 = vmatprep.mubr.bf16.mxu0 0
    %984 = vmatmul.mubr.bf16.gmra.mrb[0].mxu0 %v695
    %v985 = vpop.f32.mrb[0].mxu0
    %v986 = vadd.f32 0.0, %v985
    %v987 = vpop.f32.mrb[0].mxu0
    %v988 = vadd.f32 0.0, %v987
    %v989 = vpop.f32.mrb[0].mxu0
    %v990 = vpop.f32.mrb[0].mxu0
    %991 = vdwg.mxu0
    %992 = vmatprep.subr.bf16.mxu0 %v498
    %993 = vmatpush1.bf16.msra.mxu0 %v497
    %994 = vmatprep.subr.bf16.mxu0 %v514
    %995 = vmatpush1.bf16.msra.mxu0 %v513
    %996 = vmatprep.subr.bf16.mxu0 %v530
    %997 = vmatpush1.bf16.msra.mxu0 %v529
    %998 = vmatprep.subr.bf16.mxu0 %v546
    %999 = vmatpush1.bf16.msra.mxu0 %v545
    %1000 = vmatprep.subr.bf16.mxu0 %v562
    %1001 = vmatpush1.bf16.msra.mxu0 %v561
    %1002 = vmatprep.subr.bf16.mxu0 %v578
    %1003 = vmatpush1.bf16.msra.mxu0 %v577
    %1004 = vmatprep.subr.bf16.mxu0 %v738
    %1005 = vmatpush1.bf16.msra.mxu0 %v735
    %1006 = vmatprep.subr.bf16.mxu0 0
    %1007 = vmatpush1.bf16.msra.mxu0 0
    %1008 = vmatprep.subr.bf16.mxu0 0
    %1009 = vmatpush1.bf16.msra.mxu0 0
    %1010 = vmatprep.subr.bf16.mxu0 0
    %1011 = vmatpush1.bf16.msra.mxu0 0
    %1012 = vmatprep.subr.bf16.mxu0 0
    %1013 = vmatpush1.bf16.msra.mxu0 0
    %1014 = vmatprep.subr.bf16.mxu0 0
    %1015 = vmatpush1.bf16.msra.mxu0 0
    %1016 = vmatprep.subr.bf16.mxu0 0
    %1017 = vmatpush1.bf16.msra.mxu0 0
    %1018 = vmatprep.subr.bf16.mxu0 0
    %1019 = vmatpush1.bf16.msra.mxu0 0
    %1020 = vmatprep.subr.bf16.mxu0 0
    %1021 = vmatpush1.bf16.msra.mxu0 0
    %1022 = vmatprep.subr.bf16.mxu0 0
    %1023 = vmatpush1.bf16.msra.mxu0 0
    %1024 = vmatprep.mubr.bf16.mxu0 0
    %1025 = vmatmul.mubr.bf16.gmra.mrb[0].mxu0 %v695
    %v1026 = vpop.f32.mrb[0].mxu0
    %v1027 = vadd.f32 0.0, %v1026
    %v1028 = vpop.f32.mrb[0].mxu0
    %v1029 = vadd.f32 0.0, %v1028
    %v1030 = vpop.f32.mrb[0].mxu0
    %v1031 = vpop.f32.mrb[0].mxu0
    %1032 = vdwg.mxu0
    %1033 = vmatprep.subr.bf16.mxu0 %v500
    %1034 = vmatpush1.bf16.msra.mxu0 %v499
    %1035 = vmatprep.subr.bf16.mxu0 %v516
    %1036 = vmatpush1.bf16.msra.mxu0 %v515
    %1037 = vmatprep.subr.bf16.mxu0 %v532
    %1038 = vmatpush1.bf16.msra.mxu0 %v531
    %1039 = vmatprep.subr.bf16.mxu0 %v548
    %1040 = vmatpush1.bf16.msra.mxu0 %v547
    %1041 = vmatprep.subr.bf16.mxu0 %v564
    %1042 = vmatpush1.bf16.msra.mxu0 %v563
    %1043 = vmatprep.subr.bf16.mxu0 %v580
    %1044 = vmatpush1.bf16.msra.mxu0 %v579
    %1045 = vmatprep.subr.bf16.mxu0 %v744
    %1046 = vmatpush1.bf16.msra.mxu0 %v741
    %1047 = vmatprep.subr.bf16.mxu0 0
    %1048 = vmatpush1.bf16.msra.mxu0 0
    %1049 = vmatprep.subr.bf16.mxu0 0
    %1050 = vmatpush1.bf16.msra.mxu0 0
    %1051 = vmatprep.subr.bf16.mxu0 0
    %1052 = vmatpush1.bf16.msra.mxu0 0
    %1053 = vmatprep.subr.bf16.mxu0 0
    %1054 = vmatpush1.bf16.msra.mxu0 0
    %1055 = vmatprep.subr.bf16.mxu0 0
    %1056 = vmatpush1.bf16.msra.mxu0 0
    %1057 = vmatprep.subr.bf16.mxu0 0
    %1058 = vmatpush1.bf16.msra.mxu0 0
    %1059 = vmatprep.subr.bf16.mxu0 0
    %1060 = vmatpush1.bf16.msra.mxu0 0
    %1061 = vmatprep.subr.bf16.mxu0 0
    %1062 = vmatpush1.bf16.msra.mxu0 0
    %1063 = vmatprep.subr.bf16.mxu0 0
    %1064 = vmatpush1.bf16.msra.mxu0 0
    %1065 = vmatprep.mubr.bf16.mxu0 0
    %1066 = vmatmul.mubr.bf16.gmra.mrb[0].mxu0 %v695
    %v1067 = vpop.f32.mrb[0].mxu0
    %v1068 = vadd.f32 0.0, %v1067
    %v1069 = vpop.f32.mrb[0].mxu0
    %v1070 = vadd.f32 0.0, %v1069
    %v1071 = vpop.f32.mrb[0].mxu0
    %v1072 = vpop.f32.mrb[0].mxu0
    %1073 = vdwg.mxu0
    %v1074 = vld [vmem:[#allocation7] sm:$0xff]
    %v1075 = vld [vmem:[#allocation7 + $0x8] sm:$0xff]
    %v1078 = vlaneseq
    %v1079 = vshrl.u32 %v1078, 7
    %v1080 = vsub.s32 0, %v1079
    %v1081 = vrot.slane %v1074, %v1080
    %v1082 = vlaneseq
    %v1083 = vshrl.u32 %v1082, 7
    %v1084 = vsub.s32 1, %v1083
    %v1085 = vrot.slane %v1074, %v1084
    %v1086 = vlaneseq
    %v1087 = vshrl.u32 %v1086, 7
    %v1088 = vsub.s32 2, %v1087
    %v1089 = vrot.slane %v1074, %v1088
    %v1090 = vlaneseq
    %v1091 = vshrl.u32 %v1090, 7
    %v1092 = vsub.s32 3, %v1091
    %v1093 = vrot.slane %v1074, %v1092
    %v1094 = vlaneseq
    %v1095 = vshrl.u32 %v1094, 7
    %v1096 = vsub.s32 4, %v1095
    %v1097 = vrot.slane %v1074, %v1096
    %v1098 = vlaneseq
    %v1099 = vshrl.u32 %v1098, 7
    %v1100 = vsub.s32 5, %v1099
    %v1101 = vrot.slane %v1074, %v1100
    %v1102 = vlaneseq
    %v1103 = vshrl.u32 %v1102, 7
    %v1104 = vsub.s32 6, %v1103
    %v1105 = vrot.slane %v1074, %v1104
    %v1106 = vlaneseq
    %v1107 = vshrl.u32 %v1106, 7
    %v1108 = vsub.s32 7, %v1107
    %v1109 = vrot.slane %v1074, %v1108
    %v1110 = vlaneseq
    %v1111 = vshrl.u32 %v1110, 7
    %v1112 = vsub.s32 0, %v1111
    %v1113 = vrot.slane %v1075, %v1112
    %v1114 = vlaneseq
    %v1115 = vshrl.u32 %v1114, 7
    %v1116 = vsub.s32 1, %v1115
    %v1117 = vrot.slane %v1075, %v1116
    %v1118 = vlaneseq
    %v1119 = vshrl.u32 %v1118, 7
    %v1120 = vsub.s32 2, %v1119
    %v1121 = vrot.slane %v1075, %v1120
    %v1122 = vlaneseq
    %v1123 = vshrl.u32 %v1122, 7
    %v1124 = vsub.s32 3, %v1123
    %v1125 = vrot.slane %v1075, %v1124
    %v1126 = vlaneseq
    %v1127 = vshrl.u32 %v1126, 7
    %v1128 = vsub.s32 4, %v1127
    %v1129 = vrot.slane %v1075, %v1128
    %v1130 = vlaneseq
    %v1131 = vshrl.u32 %v1130, 7
    %v1132 = vsub.s32 5, %v1131
    %v1133 = vrot.slane %v1075, %v1132
    %v1134 = vlaneseq
    %v1135 = vshrl.u32 %v1134, 7
    %v1136 = vsub.s32 6, %v1135
    %v1137 = vrot.slane %v1075, %v1136
    %v1138 = vlaneseq
    %v1139 = vshrl.u32 %v1138, 7
    %v1140 = vsub.s32 7, %v1139
    %v1141 = vrot.slane %v1075, %v1140
    %v1158 = vmul.f32 %v781, %v1081
    %v1159 = vmul.f32 %v783, %v1085
    %v1160 = vmul.f32 %v822, %v1089
    %v1161 = vmul.f32 %v824, %v1093
    %v1162 = vmul.f32 %v863, %v1097
    %v1163 = vmul.f32 %v865, %v1101
    %v1164 = vmul.f32 %v904, %v1105
    %v1165 = vmul.f32 %v906, %v1109
    %v1166 = vmul.f32 %v945, %v1113
    %v1167 = vmul.f32 %v947, %v1117
    %v1168 = vmul.f32 %v986, %v1121
    %v1169 = vmul.f32 %v988, %v1125
    %v1170 = vmul.f32 %v1027, %v1129
    %v1171 = vmul.f32 %v1029, %v1133
    %v1172 = vmul.f32 %v1068, %v1137
    %v1173 = vmul.f32 %v1070, %v1141
    %v1174 = vld [vmem:[#allocation8] sm:$0xff]
    %v1175 = vld [vmem:[#allocation8 + $0x8] sm:$0xff]
    %v1178 = vlaneseq
    %v1179 = vshrl.u32 %v1178, 7
    %v1180 = vsub.s32 0, %v1179
    %v1181 = vrot.slane %v1174, %v1180
    %v1182 = vlaneseq
    %v1183 = vshrl.u32 %v1182, 7
    %v1184 = vsub.s32 1, %v1183
    %v1185 = vrot.slane %v1174, %v1184
    %v1186 = vlaneseq
    %v1187 = vshrl.u32 %v1186, 7
    %v1188 = vsub.s32 2, %v1187
    %v1189 = vrot.slane %v1174, %v1188
    %v1190 = vlaneseq
    %v1191 = vshrl.u32 %v1190, 7
    %v1192 = vsub.s32 3, %v1191
    %v1193 = vrot.slane %v1174, %v1192
    %v1194 = vlaneseq
    %v1195 = vshrl.u32 %v1194, 7
    %v1196 = vsub.s32 4, %v1195
    %v1197 = vrot.slane %v1174, %v1196
    %v1198 = vlaneseq
    %v1199 = vshrl.u32 %v1198, 7
    %v1200 = vsub.s32 5, %v1199
    %v1201 = vrot.slane %v1174, %v1200
    %v1202 = vlaneseq
    %v1203 = vshrl.u32 %v1202, 7
    %v1204 = vsub.s32 6, %v1203
    %v1205 = vrot.slane %v1174, %v1204
    %v1206 = vlaneseq
    %v1207 = vshrl.u32 %v1206, 7
    %v1208 = vsub.s32 7, %v1207
    %v1209 = vrot.slane %v1174, %v1208
    %v1210 = vlaneseq
    %v1211 = vshrl.u32 %v1210, 7
    %v1212 = vsub.s32 0, %v1211
    %v1213 = vrot.slane %v1175, %v1212
    %v1214 = vlaneseq
    %v1215 = vshrl.u32 %v1214, 7
    %v1216 = vsub.s32 1, %v1215
    %v1217 = vrot.slane %v1175, %v1216
    %v1218 = vlaneseq
    %v1219 = vshrl.u32 %v1218, 7
    %v1220 = vsub.s32 2, %v1219
    %v1221 = vrot.slane %v1175, %v1220
    %v1222 = vlaneseq
    %v1223 = vshrl.u32 %v1222, 7
    %v1224 = vsub.s32 3, %v1223
    %v1225 = vrot.slane %v1175, %v1224
    %v1226 = vlaneseq
    %v1227 = vshrl.u32 %v1226, 7
    %v1228 = vsub.s32 4, %v1227
    %v1229 = vrot.slane %v1175, %v1228
    %v1230 = vlaneseq
    %v1231 = vshrl.u32 %v1230, 7
    %v1232 = vsub.s32 5, %v1231
    %v1233 = vrot.slane %v1175, %v1232
    %v1234 = vlaneseq
    %v1235 = vshrl.u32 %v1234, 7
    %v1236 = vsub.s32 6, %v1235
    %v1237 = vrot.slane %v1175, %v1236
    %v1238 = vlaneseq
    %v1239 = vshrl.u32 %v1238, 7
    %v1240 = vsub.s32 7, %v1239
    %v1241 = vrot.slane %v1175, %v1240
    %v1258 = vadd.f32 %v1158, %v1181
    %v1259 = vadd.f32 %v1159, %v1185
    %v1260 = vadd.f32 %v1160, %v1189
    %v1261 = vadd.f32 %v1161, %v1193
    %v1262 = vadd.f32 %v1162, %v1197
    %v1263 = vadd.f32 %v1163, %v1201
    %v1264 = vadd.f32 %v1164, %v1205
    %v1265 = vadd.f32 %v1165, %v1209
    %v1266 = vadd.f32 %v1166, %v1213
    %v1267 = vadd.f32 %v1167, %v1217
    %v1268 = vadd.f32 %v1168, %v1221
    %v1269 = vadd.f32 %v1169, %v1225
    %v1270 = vadd.f32 %v1170, %v1229
    %v1271 = vadd.f32 %v1171, %v1233
    %v1272 = vadd.f32 %v1172, %v1237
    %v1273 = vadd.f32 %v1173, %v1241
    %vm1274 = vcmp.ge.f32.partialorder %v1258, 0.0
    %vm1275 = vcmp.ge.f32.partialorder %v1259, 0.0
    %vm1276 = vcmp.ge.f32.partialorder %v1260, 0.0
    %vm1277 = vcmp.ge.f32.partialorder %v1261, 0.0
    %vm1278 = vcmp.ge.f32.partialorder %v1262, 0.0
    %vm1279 = vcmp.ge.f32.partialorder %v1263, 0.0
    %vm1280 = vcmp.ge.f32.partialorder %v1264, 0.0
    %vm1281 = vcmp.ge.f32.partialorder %v1265, 0.0
    %vm1282 = vcmp.ge.f32.partialorder %v1266, 0.0
    %vm1283 = vcmp.ge.f32.partialorder %v1267, 0.0
    %vm1284 = vcmp.ge.f32.partialorder %v1268, 0.0
    %vm1285 = vcmp.ge.f32.partialorder %v1269, 0.0
    %vm1286 = vcmp.ge.f32.partialorder %v1270, 0.0
    %vm1287 = vcmp.ge.f32.partialorder %v1271, 0.0
    %vm1288 = vcmp.ge.f32.partialorder %v1272, 0.0
    %vm1289 = vcmp.ge.f32.partialorder %v1273, 0.0
    %v1290 = vmul.f32 %v1258, 0.2
    %v1291 = vmul.f32 %v1259, 0.2
    %v1292 = vmul.f32 %v1260, 0.2
    %v1293 = vmul.f32 %v1261, 0.2
    %v1294 = vmul.f32 %v1262, 0.2
    %v1295 = vmul.f32 %v1263, 0.2
    %v1296 = vmul.f32 %v1264, 0.2
    %v1297 = vmul.f32 %v1265, 0.2
    %v1298 = vmul.f32 %v1266, 0.2
    %v1299 = vmul.f32 %v1267, 0.2
    %v1300 = vmul.f32 %v1268, 0.2
    %v1301 = vmul.f32 %v1269, 0.2
    %v1302 = vmul.f32 %v1270, 0.2
    %v1303 = vmul.f32 %v1271, 0.2
    %v1304 = vmul.f32 %v1272, 0.2
    %v1305 = vmul.f32 %v1273, 0.2
    %v1306 = vsel %vm1274, %v1258, %v1290
    %v1307 = vsel %vm1275, %v1259, %v1291
    %v1308 = vsel %vm1276, %v1260, %v1292
    %v1309 = vsel %vm1277, %v1261, %v1293
    %v1310 = vsel %vm1278, %v1262, %v1294
    %v1311 = vsel %vm1279, %v1263, %v1295
    %v1312 = vsel %vm1280, %v1264, %v1296
    %v1313 = vsel %vm1281, %v1265, %v1297
    %v1314 = vsel %vm1282, %v1266, %v1298
    %v1315 = vsel %vm1283, %v1267, %v1299
    %v1316 = vsel %vm1284, %v1268, %v1300
    %v1317 = vsel %vm1285, %v1269, %v1301
    %v1318 = vsel %vm1286, %v1270, %v1302
    %v1319 = vsel %vm1287, %v1271, %v1303
    %v1320 = vsel %vm1288, %v1272, %v1304
    %v1321 = vsel %vm1289, %v1273, %v1305
    %v1322 = vpack.c.bf16 %v1306, %v1306
    %v1323 = vpack.c.bf16 %v1307, %v1307
    %v1324 = vpack.c.bf16 %v1308, %v1308
    %v1325 = vpack.c.bf16 %v1309, %v1309
    %v1326 = vpack.c.bf16 %v1310, %v1310
    %v1327 = vpack.c.bf16 %v1311, %v1311
    %v1328 = vpack.c.bf16 %v1312, %v1312
    %v1329 = vpack.c.bf16 %v1313, %v1313
    %v1330 = vpack.c.bf16 %v1314, %v1314
    %v1331 = vpack.c.bf16 %v1315, %v1315
    %v1332 = vpack.c.bf16 %v1316, %v1316
    %v1333 = vpack.c.bf16 %v1317, %v1317
    %v1334 = vpack.c.bf16 %v1318, %v1318
    %v1335 = vpack.c.bf16 %v1319, %v1319
    %v1336 = vpack.c.bf16 %v1320, %v1320
    %v1337 = vpack.c.bf16 %v1321, %v1321
    %v1354 = vcombine.low %v1322, %v1323
    %v1355 = vcombine.low %v1324, %v1325
    %v1356 = vcombine.low %v1326, %v1327
    %v1357 = vcombine.low %v1328, %v1329
    %v1359 = vunpack.c.l.s4 1966171168
    %v1360 = vunpack.c.0.s8 %v1359
    %v1361 = vlaneseq
    %v1362 = vshrl.u32 %v1361, 7
    %v1363 = vsub.s32 %v1360, %v1362
    %v1364 = vrot.slane %v1354, %v1363
    %v1366 = vunpack.c.l.s4 1966171168
    %v1367 = vunpack.c.0.s8 %v1366
    %v1368 = vlaneseq
    %v1369 = vshrl.u32 %v1368, 7
    %v1370 = vsub.s32 %v1367, %v1369
    %v1371 = vrot.slane %v1355, %v1370
    %v1373 = vunpack.c.l.s4 1966171168
    %v1374 = vunpack.c.0.s8 %v1373
    %v1375 = vlaneseq
    %v1376 = vshrl.u32 %v1375, 7
    %v1377 = vsub.s32 %v1374, %v1376
    %v1378 = vrot.slane %v1356, %v1377
    %v1380 = vunpack.c.l.s4 1966171168
    %v1381 = vunpack.c.0.s8 %v1380
    %v1382 = vlaneseq
    %v1383 = vshrl.u32 %v1382, 7
    %v1384 = vsub.s32 %v1381, %v1383
    %v1385 = vrot.slane %v1357, %v1384
    %v1386 = vcombine.low %v1364, %v1371
    %v1387 = vcombine.low %v1378, %v1385
    %v1389 = vunpack.c.l.s4 1966171168
    %v1390 = vunpack.c.0.s8 %v1389
    %v1391 = vlaneseq
    %v1392 = vshrl.u32 %v1391, 7
    %v1393 = vsub.s32 %v1390, %v1392
    %v1394 = vrot.slane %v1386, %v1393
    %v1396 = vunpack.c.l.s4 1966171168
    %v1397 = vunpack.c.0.s8 %v1396
    %v1398 = vlaneseq
    %v1399 = vshrl.u32 %v1398, 7
    %v1400 = vsub.s32 %v1397, %v1399
    %v1401 = vrot.slane %v1387, %v1400
    %v1402 = vcombine.low %v1394, %v1401
    %v1403 = vcombine.low %v1330, %v1331
    %v1404 = vcombine.low %v1332, %v1333
    %v1405 = vcombine.low %v1334, %v1335
    %v1406 = vcombine.low %v1336, %v1337
    %v1408 = vunpack.c.l.s4 1966171168
    %v1409 = vunpack.c.0.s8 %v1408
    %v1410 = vlaneseq
    %v1411 = vshrl.u32 %v1410, 7
    %v1412 = vsub.s32 %v1409, %v1411
    %v1413 = vrot.slane %v1403, %v1412
    %v1415 = vunpack.c.l.s4 1966171168
    %v1416 = vunpack.c.0.s8 %v1415
    %v1417 = vlaneseq
    %v1418 = vshrl.u32 %v1417, 7
    %v1419 = vsub.s32 %v1416, %v1418
    %v1420 = vrot.slane %v1404, %v1419
    %v1422 = vunpack.c.l.s4 1966171168
    %v1423 = vunpack.c.0.s8 %v1422
    %v1424 = vlaneseq
    %v1425 = vshrl.u32 %v1424, 7
    %v1426 = vsub.s32 %v1423, %v1425
    %v1427 = vrot.slane %v1405, %v1426
    %v1429 = vunpack.c.l.s4 1966171168
    %v1430 = vunpack.c.0.s8 %v1429
    %v1431 = vlaneseq
    %v1432 = vshrl.u32 %v1431, 7
    %v1433 = vsub.s32 %v1430, %v1432
    %v1434 = vrot.slane %v1406, %v1433
    %v1435 = vcombine.low %v1413, %v1420
    %v1436 = vcombine.low %v1427, %v1434
    %v1438 = vunpack.c.l.s4 1966171168
    %v1439 = vunpack.c.0.s8 %v1438
    %v1440 = vlaneseq
    %v1441 = vshrl.u32 %v1440, 7
    %v1442 = vsub.s32 %v1439, %v1441
    %v1443 = vrot.slane %v1435, %v1442
    %v1445 = vunpack.c.l.s4 1966171168
    %v1446 = vunpack.c.0.s8 %v1445
    %v1447 = vlaneseq
    %v1448 = vshrl.u32 %v1447, 7
    %v1449 = vsub.s32 %v1446, %v1448
    %v1450 = vrot.slane %v1436, %v1449
    %v1451 = vcombine.low %v1443, %v1450
    %1454 = vst [vmem:[#allocation10] sm:$0xff] %v1402
    %1455 = vst [vmem:[#allocation10 + $0x8] sm:$0xff] %v1451
    // Predicated region
    $region34: #{tpu_custom_call.1} parent=1 // pred_check
      _
    $region35: #{tpu_custom_call.1} parent=1 // pred_check_branch
      %1457 = sbr.rel (0) target = $region37
    $region36: #{tpu_custom_call.1} parent=1 // pred_region
      %s1459 = ssub.s32 256, 256
      %1460 = vsyncadd [#allocation4], %s1459
      %s1462 = sshll.u32 [#allocation10], 4
      %s1463 = int_to_ptr.vmem [resolvable:$true] %s1462
      %1465 = dma.vmem_to_hbm [thread:$0]  %s1463, 256, %s4, [#allocation4]
    $region37: #{tpu_custom_call.1} parent=1 // pred_fallthru
      _
    // Predicated region
    $region38: #{tpu_custom_call.1} parent=1 // pred_check
      _
    $region39: #{tpu_custom_call.1} parent=1 // pred_check_branch
      %1467 = sbr.rel (0) target = $region41
    $region40: #{tpu_custom_call.1} parent=1 // pred_region
      %1468 = dma.done [#allocation4], 256
    $region41: #{tpu_custom_call.1} parent=1 // pred_fallthru
      _
    %1469 = vsyncpa [#allocation3], 1
    %1470 = vsyncpa [#allocation6], 1
    %1471 = vsyncpa [#allocation9], 1
    %1472 = vsyncpa [#allocation4], 1

</llo_original>
